<compile_context>
chip_gen: v5e
topology: v5e:2x2
jax: 0.10.0
libtpu: 0.0.40
codegen_flags: <defaults>
</compile_context>

<pallas_src>
import functools

import jax
import jax.numpy as jnp
from jax.experimental import pallas as pl
from jax.experimental.pallas import tpu as pltpu


def _ceil_to(x, m):
    return -(-x // m) * m


def _vmem_budgets():
    """(input tile budget, vmem_limit_bytes) per TPU generation."""
    try:
        kind = jax.devices()[0].device_kind.lower()
    except Exception:  # pragma: no cover - defensive
        kind = ""
    if "v5" in kind or "v6" in kind:
        # 128 MiB physical VMEM: afford bigger tiles / fewer grid steps.
        return 32 * 1024 * 1024, 64 * 1024 * 1024
    # v7x (64 MiB per TC) or unknown: stay conservative.
    return 16 * 1024 * 1024, 48 * 1024 * 1024


def _plan(n_elems, dtypes):
    """Choose lane width, block rows and slab layout for the flattened stream."""
    lane_w = 128
    for cand in (512, 256, 128):
        if n_elems % cand == 0:
            lane_w = cand
            break
    exact = (n_elems % lane_w == 0)
    rows = -(-n_elems // lane_w)
    zero_copy = exact and rows >= 8  # reshape without any padded HBM copy

    input_budget, vmem_limit = _vmem_budgets()
    bytes_per_row = lane_w * sum(jnp.dtype(d).itemsize for d in dtypes)
    # Double-buffered input tiles (all arrays) must fit the input budget.
    max_br = max(8, ((input_budget // (2 * bytes_per_row)) // 8) * 8)

    if zero_copy:
        br = min(max_br, max(8, (rows // 8) * 8))
    else:
        br = min(max_br, _ceil_to(rows, 8))
    if rows >= 16:
        # Guarantee >= 2 grid blocks so the "parallel" axis can use both v7x TCs.
        br = min(br, _ceil_to(-(-rows // 2), 8))
    br = max(8, br)

    if zero_copy:
        slab_rows = rows
        num_blocks = -(-rows // br)
        needs_mask = (rows % br != 0)  # partial last block reads garbage -> mask
    else:
        slab_rows = _ceil_to(_ceil_to(rows, 8), br)
        num_blocks = slab_rows // br
        needs_mask = False  # padded region is zero-filled -> |0-0| = 0

    return lane_w, br, rows, slab_rows, num_blocks, zero_copy, needs_mask, vmem_limit


def _l1_partial_kernel(*refs, n_preds, row_groups, block_rows, rows_valid, needs_mask):
    """Per-block partial sums of |pred_p - gt| over all preds.

    refs = (gt_ref, pred_ref_0, ..., pred_ref_{P-1}, out_ref)
    The (BR, lane_w) block is consumed in 8-row chunks; each chunk's |diff| is
    accumulated directly into an (8, lane_w) vreg-resident partial (no
    whole-tile temporaries), which is written lane-dense to the output slab.
    """
    gt_ref = refs[0]
    pred_refs = refs[1:1 + n_preds]
    out_ref = refs[1 + n_preds]
    lane_w = out_ref.shape[-1]

    if needs_mask:
        row_iota = jax.lax.broadcasted_iota(jnp.int32, (8, lane_w), 0)
        block_base = pl.program_id(0) * block_rows

    def add_chunk(start_row, part):
        g = gt_ref[pl.ds(start_row, 8), :].astype(jnp.float32)
        acc = part
        for p_ref in pred_refs:
            d = jnp.abs(p_ref[pl.ds(start_row, 8), :].astype(jnp.float32) - g)
            if needs_mask:
                valid = (block_base + start_row + row_iota) < rows_valid
                d = jnp.where(valid, d, 0.0)  # mask the diff, not one operand
            acc = acc + d
        return acc

    init = jnp.zeros((8, lane_w), jnp.float32)
    if row_groups <= 8:
        part = init
        for gidx in range(row_groups):
            part = add_chunk(gidx * 8, part)
    else:
        def body(gidx, part):
            return add_chunk(pl.multiple_of(gidx * 8, 8), part)
        part = jax.lax.fori_loop(0, row_groups, body, init, unroll=4)

    out_ref[...] = part


def l1_sum_of_means(gt, preds, post_scale):
    """post_scale * sum_p mean(|pred_p - gt|); gt streamed from HBM once."""
    preds = list(preds)
    for p in preds:
        assert p.shape == gt.shape, (p.shape, gt.shape)
    n = int(gt.size)
    dtypes = [gt.dtype] + [p.dtype for p in preds]

    (lane_w, br, rows, slab_rows, num_blocks,
     zero_copy, needs_mask, vmem_limit) = _plan(n, dtypes)

    def to_slab(x):
        flat = x.reshape(-1)  # contiguous reshape: no data movement
        if zero_copy:
            return flat.reshape(rows, lane_w)
        # Fallback (tiny tensors or n % 128 != 0): pad only what is needed.
        total = slab_rows * lane_w
        flat = jnp.pad(flat, (0, total - n))
        return flat.reshape(slab_rows, lane_w)

    slabs = [to_slab(gt)] + [to_slab(p) for p in preds]

    kernel = functools.partial(
        _l1_partial_kernel,
        n_preds=len(preds),
        row_groups=br // 8,
        block_rows=br,
        rows_valid=rows,
        needs_mask=needs_mask,
    )

    in_spec = pl.BlockSpec((br, lane_w), lambda i: (i, 0))
    partials = pl.pallas_call(
        kernel,
        out_shape=jax.ShapeDtypeStruct((num_blocks * 8, lane_w), jnp.float32),
        grid_spec=pltpu.PrefetchScalarGridSpec(
            num_scalar_prefetch=0,
            grid=(num_blocks,),
            in_specs=[in_spec] * len(slabs),
            out_specs=pl.BlockSpec((8, lane_w), lambda i: (i, 0)),
        ),
        compiler_params=pltpu.CompilerParams(
            dimension_semantics=("parallel",),
            vmem_limit_bytes=vmem_limit,
        ),
    )(*slabs)

    # Tiny final reduction in JAX; invalid/padded positions contribute 0.
    return jnp.sum(partials) * jnp.float32(post_scale / n)


def _bicubic_weight_matrix(out_size, in_size):
    """1-D PyTorch bicubic (A=-0.75) weights with align_corners=True."""
    A = -0.75
    step = (in_size - 1) / (out_size - 1) if out_size > 1 else 0.0
    i = jnp.arange(out_size, dtype=jnp.float32)
    real = i * jnp.float32(step)
    idx = jnp.floor(real)
    t = real - idx

    def cc1(x):  # |d| in [0, 1)
        return ((A + 2.0) * x - (A + 3.0)) * x * x + 1.0

    def cc2(x):  # |d| in [1, 2)
        return ((A * x - 5.0 * A) * x + 8.0 * A) * x - 4.0 * A

    coeffs = jnp.stack([cc2(t + 1.0), cc1(t), cc1(1.0 - t), cc2(2.0 - t)], axis=1)
    inds = idx[:, None].astype(jnp.int32) + jnp.arange(-1, 3, dtype=jnp.int32)[None, :]
    inds = jnp.clip(inds, 0, in_size - 1)  # border replication, matches PyTorch

    w_mat = jnp.zeros((out_size, in_size), dtype=jnp.float32)
    w_mat = w_mat.at[jnp.arange(out_size)[:, None], inds].add(coeffs)
    return w_mat


def bicubic_interpolate_align_corners(x, out_hw):
    """interpolate(x, size=out_hw, mode='bicubic', align_corners=True) on NCHW."""
    # TODO(synk): fuse this separable resample (two small MXU matmuls) into the
    # L1 pallas_call to avoid materializing tmp in HBM for the mismatched branch.
    out_h, out_w = out_hw
    in_h, in_w = x.shape[-2], x.shape[-1]
    wh = _bicubic_weight_matrix(out_h, in_h)
    ww = _bicubic_weight_matrix(out_w, in_w)
    return jnp.einsum("ih,jw,nchw->ncij", wh, ww, x.astype(jnp.float32))


def dsr_loss(tensors):
    """JAX/Pallas equivalent of DSRLoss.forward."""
    refine = tensors["refine"]
    if isinstance(refine, (list, tuple)):
        refine = refine[-1]
    gt = tensors["gt_depth_hr"]
    gh, gw = gt.shape[-2], gt.shape[-1]

    loss = jnp.float32(0.0)
    full_res_preds = []  # predictions compared directly against gt

    rh, rw = refine.shape[-2], refine.shape[-1]
    if rh != gh or rw != gw:
        # PyTorch crops both operands to the common min size.
        h, w = min(rh, gh), min(rw, gw)
        # |255*r - 255*g| = 255*|r - g|: 255 applied to the scalar mean.
        loss = loss + l1_sum_of_means(gt[:, :, :h, :w], [refine[:, :, :h, :w]], 255.0)
    else:
        full_res_preds.append(refine)

    for coarse in tensors["coarse"]:
        ch, cw = coarse.shape[-2], coarse.shape[-1]
        if ch != gh or cw != gw:
            # interpolate(255*g) = 255*interpolate(g) (exact, interpolation is
            # linear), so the 255 is applied to the scalar mean instead.
            tmp = bicubic_interpolate_align_corners(gt, (ch, cw))
            loss = loss + l1_sum_of_means(tmp, [coarse], 255.0)
        else:
            full_res_preds.append(coarse)

    if full_res_preds:
        # Fused: gt streamed from HBM once for all full-resolution loss terms.
        loss = loss + l1_sum_of_means(gt, full_res_preds, 255.0)

    return loss


def _dsr_loss_reference(tensors):
    """Pure-JAX mirror of the PyTorch forward (for correctness checking)."""
    refine = tensors["refine"]
    if isinstance(refine, (list, tuple)):
        refine = refine[-1]
    refine = refine.astype(jnp.float32) * 255.0
    gt = tensors["gt_depth_hr"].astype(jnp.float32) * 255.0
    gh, gw = gt.shape[-2], gt.shape[-1]

    rh, rw = refine.shape[-2], refine.shape[-1]
    if rh != gh or rw != gw:
        h, w = min(rh, gh), min(rw, gw)
        loss = jnp.mean(jnp.abs(refine[:, :, :h, :w] - gt[:, :, :h, :w]))
    else:
        loss = jnp.mean(jnp.abs(refine - gt))

    for coarse in tensors["coarse"]:
        ch, cw = coarse.shape[-2], coarse.shape[-1]
        c = coarse.astype(jnp.float32) * 255.0
        if ch != gh or cw != gw:
            tmp = bicubic_interpolate_align_corners(gt, (ch, cw))
            loss = loss + jnp.mean(jnp.abs(c - tmp))
        else:
            loss = loss + jnp.mean(jnp.abs(c - gt))
    return loss


if __name__ == "__main__":
    key = jax.random.PRNGKey(0)
    k1, k2, k3, k4, k5 = jax.random.split(key, 5)

    B, C, H, W = 2, 1, 16, 16  # depth maps, NCHW

    gt_depth_hr = jax.random.uniform(k1, (B, C, H, W), dtype=jnp.float32)
    # 'refine' given as a list -> forward uses the last element
    refine_list = [
        jax.random.uniform(k2, (B, C, H, W), dtype=jnp.float32),
        jax.random.uniform(k3, (B, C, H, W), dtype=jnp.float32),
    ]
    # one coarse prediction at half resolution (exercises the bicubic branch)
    # and one at full resolution (fused direct-L1 branch together with refine)
    coarses = [
        jax.random.uniform(k4, (B, C, H // 2, W // 2), dtype=jnp.float32),
        jax.random.uniform(k5, (B, C, H, W), dtype=jnp.float32),
    ]

    tensors = {"refine": refine_list, "gt_depth_hr": gt_depth_hr, "coarse": coarses}

    loss = dsr_loss(tensors)
    jax.block_until_ready(loss)

    ref = _dsr_loss_reference(tensors)
    jax.block_until_ready(ref)
    assert jnp.allclose(loss, ref, rtol=2e-5, atol=1e-4), (loss, ref)

    print("KERNEL_OK")
</pallas_src>

<mosaic_0001>
module attributes {stable_mosaic.version = 11 : i64} {
  func.func @_l1_partial_kernel(%arg0: i32, %arg1: memref<8x128xf32, #tpu.memory_space<vmem>>, %arg2: memref<8x128xf32, #tpu.memory_space<vmem>>, %arg3: memref<8x128xf32, #tpu.memory_space<vmem>>) attributes {dimension_semantics = [#tpu.dimension_semantics<parallel>], iteration_bounds = array<i64: 1>, scalar_prefetch = 0 : i64, scratch_operands = 0 : i64, tpu.core_type = #tpu.core_type<tc>, window_params = [{transform_indices = @transform_0, window_bounds = array<i64: 8, 128>}, {transform_indices = @transform_1, window_bounds = array<i64: 8, 128>}, {transform_indices = @transform_2, window_bounds = array<i64: 8, 128>}]} {
    %cst = arith.constant 0.000000e+00 : f32
    %0 = vector.broadcast %cst : f32 to vector<8x128xf32>
    %c0 = arith.constant 0 : index
    %c0_0 = arith.constant 0 : index
    %1 = vector.load %arg1[%c0, %c0_0] : memref<8x128xf32, #tpu.memory_space<vmem>>, vector<8x128xf32>
    %c0_1 = arith.constant 0 : index
    %c0_2 = arith.constant 0 : index
    %2 = vector.load %arg2[%c0_1, %c0_2] : memref<8x128xf32, #tpu.memory_space<vmem>>, vector<8x128xf32>
    %3 = arith.subf %2, %1 : vector<8x128xf32>
    %4 = math.absf %3 : vector<8x128xf32>
    %5 = arith.addf %0, %4 : vector<8x128xf32>
    %c0_3 = arith.constant 0 : index
    %c0_4 = arith.constant 0 : index
    %6 = vector.load %arg3[%c0_3, %c0_4] : memref<8x128xf32, #tpu.memory_space<vmem>>, vector<8x128xf32>
    tpu.vector_store %arg3[%c0_3, %c0_4], %5 {strides = array<i32>} : memref<8x128xf32, #tpu.memory_space<vmem>>, vector<8x128xf32>,
    return
  }
  func.func @transform_0(%arg0: i32) -> (i32, i32) {
    %c0_i32 = arith.constant 0 : i32
    %c0_i32_0 = arith.constant 0 : i32
    return %arg0, %c0_i32 : i32, i32
  }
  func.func @transform_1(%arg0: i32) -> (i32, i32) {
    %c0_i32 = arith.constant 0 : i32
    %c0_i32_0 = arith.constant 0 : i32
    return %arg0, %c0_i32 : i32, i32
  }
  func.func @transform_2(%arg0: i32) -> (i32, i32) {
    %c0_i32 = arith.constant 0 : i32
    %c0_i32_0 = arith.constant 0 : i32
    return %arg0, %c0_i32 : i32, i32
  }
}

</mosaic_0001>

<llo_original>
// kernel: tpu_custom_call.1
$region0: #{tpu_custom_call.1}
  #allocation0 [shape = 'u32[]', space=smem, size = 0x4, offset = 0x4, fixed_abs, tag = 'smem constant byte address 0x4 - core index']
  #allocation1 [shape = 'u32[72,128]{1,0:T(1,128)}', space=vmem, size = 0x9000, scoped, tag = 'internal scratch']
  %s0 = inlined_call_operand.hbm [shape: f32[8,128], index: 0, kind: input, shape index: {}]
  %s1 = inlined_call_operand.hbm [shape: f32[8,128], index: 1, kind: input, shape index: {}]
  %s2 = inlined_call_operand.hbm [shape: f32[8,128], index: 2, kind: output, shape index: {}]
  %s3 = sld [smem:[#allocation0]]
  $region26: #{tpu_custom_call.1} parent=0
    _
  %s5 = ssub.s32 1, %s3
  %s6 = scalar_select 0, %s5, %s3
  $region1: #{tpu_custom_call.1} parent=0
    #allocation2 [shape = 'u8[4096]{0}', space=vmem, size = 0x1000, scoped, tag = 'input window, operand 0, single buffered']
    #allocation3 [shape = 's32[1]{0}', space=sflag, size = 0x4, scoped, tag = 'scoped memory for tpu_custom_call.1']
    #allocation4 [shape = 's32[1]{0}', space=sflag, size = 0x4, scoped, tag = 'scoped memory for tpu_custom_call.1']
    #allocation5 [shape = 'u8[4096]{0}', space=vmem, size = 0x1000, scoped, tag = 'input window, operand 1, single buffered']
    #allocation6 [shape = 's32[1]{0}', space=sflag, size = 0x4, scoped, tag = 'scoped memory for tpu_custom_call.1']
    #allocation7 [shape = 'u8[4096]{0}', space=vmem, size = 0x1000, scoped, tag = 'output window, operand 0, single buffered']
    %7 = vsyncpa [#allocation3], 0
    %8 = vsyncpa [#allocation6], 0
    %9 = vsyncpa [#allocation4], 0
    // Predicated region
    $region2: #{tpu_custom_call.1} parent=1 // pred_check
      _
    $region3: #{tpu_custom_call.1} parent=1 // pred_check_branch
      %11 = sbr.rel (0) target = $region5
    $region4: #{tpu_custom_call.1} parent=1 // pred_region
      %13 = vsyncadd [#allocation3], 0
      %s15 = sshll.u32 %s0, 4
      %s16 = int_to_ptr.hbm [resolvable:$true] %s15
      %s17 = sshll.u32 [#allocation2], 4
      %s18 = int_to_ptr.vmem [resolvable:$true] %s17
      %20 = dma.hbm_to_vmem [thread:$0]  %s16, 128, %s18, [#allocation3]
    $region5: #{tpu_custom_call.1} parent=1 // pred_fallthru
      _
    // Predicated region
    $region6: #{tpu_custom_call.1} parent=1 // pred_check
      _
    $region7: #{tpu_custom_call.1} parent=1 // pred_check_branch
      %22 = sbr.rel (0) target = $region9
    $region8: #{tpu_custom_call.1} parent=1 // pred_region
      %24 = vsyncadd [#allocation6], 0
      %s26 = sshll.u32 %s1, 4
      %s27 = int_to_ptr.hbm [resolvable:$true] %s26
      %s28 = sshll.u32 [#allocation5], 4
      %s29 = int_to_ptr.vmem [resolvable:$true] %s28
      %31 = dma.hbm_to_vmem [thread:$0]  %s27, 128, %s29, [#allocation6]
    $region9: #{tpu_custom_call.1} parent=1 // pred_fallthru
      _
    // Predicated region
    $region10: #{tpu_custom_call.1} parent=1 // pred_check
      _
    $region11: #{tpu_custom_call.1} parent=1 // pred_check_branch
      %33 = sbr.rel (0) target = $region13
    $region12: #{tpu_custom_call.1} parent=1 // pred_region
      %35 = dma.done [#allocation3], 128
    $region13: #{tpu_custom_call.1} parent=1 // pred_fallthru
      _
    // Predicated region
    $region14: #{tpu_custom_call.1} parent=1 // pred_check
      _
    $region15: #{tpu_custom_call.1} parent=1 // pred_check_branch
      %37 = sbr.rel (0) target = $region17
    $region16: #{tpu_custom_call.1} parent=1 // pred_region
      %39 = dma.done [#allocation6], 128
    $region17: #{tpu_custom_call.1} parent=1 // pred_fallthru
      _
    %v40 = vld [vmem:[#allocation2] sm:$0xff]
    %v41 = vld [vmem:[#allocation5] sm:$0xff]
    %v42 = vsub.f32 %v41, %v40
    %v43 = vand.u32 2147483647, %v42
    %v44 = vadd.f32 %v43, 0.0
    %45 = vst [vmem:[#allocation7] sm:$0xff] %v44
    // Predicated region
    $region18: #{tpu_custom_call.1} parent=1 // pred_check
      _
    $region19: #{tpu_custom_call.1} parent=1 // pred_check_branch
      %47 = sbr.rel (0) target = $region21
    $region20: #{tpu_custom_call.1} parent=1 // pred_region
      %49 = vsyncadd [#allocation4], 0
      %s51 = sshll.u32 [#allocation7], 4
      %s52 = int_to_ptr.vmem [resolvable:$true] %s51
      %s53 = sshll.u32 %s2, 4
      %s54 = int_to_ptr.hbm [resolvable:$true] %s53
      %56 = dma.vmem_to_hbm [thread:$0]  %s52, 128, %s54, [#allocation4]
    $region21: #{tpu_custom_call.1} parent=1 // pred_fallthru
      _
    // Predicated region
    $region22: #{tpu_custom_call.1} parent=1 // pred_check
      _
    $region23: #{tpu_custom_call.1} parent=1 // pred_check_branch
      %58 = sbr.rel (0) target = $region25
    $region24: #{tpu_custom_call.1} parent=1 // pred_region
      %60 = dma.done [#allocation4], 128
    $region25: #{tpu_custom_call.1} parent=1 // pred_fallthru
      _
    %61 = vsyncpa [#allocation3], 1
    %62 = vsyncpa [#allocation6], 1
    %63 = vsyncpa [#allocation4], 1

</llo_original>
